<compile_context>
chip_gen: v7x
topology: tpu7x:2x2x1
jax: 0.10.0
libtpu: 0.0.40
codegen_flags: <defaults>
</compile_context>

<pallas_src>
import functools
import math

import jax
import jax.numpy as jnp
from jax.experimental import pallas as pl
from jax.experimental.pallas import tpu as pltpu

_MIB = 1024 * 1024


def _round_up(a, b):
    return ((a + b - 1) // b) * b


def _sublane_quantum(dtype):
    # Second-minor tiling quantum: 8 rows for 4-byte, 16 for 2-byte, 32 for 1-byte.
    return max(8, 32 // jnp.dtype(dtype).itemsize)


def _tpu_budget():
    """Return (vmem_capacity_bytes, tensorcores_per_chip) with safe fallbacks."""
    vmem_cap = 64 * _MIB      # conservative default (v7x-sized VMEM)
    num_cores = 1
    try:
        info = pltpu.get_tpu_info()
        cap = getattr(info, "vmem_capacity_bytes", None)
        if cap:
            vmem_cap = int(cap)
            # Of the target chips only v7x has 2 TensorCores, and it is also the
            # only one with <=64 MiB VMEM per core -> use that as the proxy.
            num_cores = 2 if vmem_cap <= 64 * _MIB else 1
    except Exception:
        pass
    return vmem_cap, num_cores


# ----------------------------------------------------------------------------
# Kernel bodies
# ----------------------------------------------------------------------------
def _ln_math(x, g, b, seg, eps, inv_n):
    """LayerNorm math on an f32 tile.

    x   : (tr, Dp) f32
    g,b : (1, Dp)  f32
    seg : None -> reduce over the whole lane axis (plain per-row LayerNorm), or
          a (Dp, Dp) block-diagonal ones matrix that sums each D-long lane
          segment and broadcasts the sum back to every lane of its segment
          (lane-packed small-D layout; runs on the otherwise idle MXU).
    """
    if seg is None:
        mean = jnp.mean(x, axis=-1, keepdims=True)
        xc = x - mean
        var = jnp.mean(xc * xc, axis=-1, keepdims=True)
    else:
        mean = jnp.dot(x, seg, preferred_element_type=jnp.float32) * inv_n
        xc = x - mean
        var = jnp.dot(xc * xc, seg, preferred_element_type=jnp.float32) * inv_n
    inv = jax.lax.rsqrt(var + eps)            # EUP path
    return xc * inv * g + b


def _ln_kernel(x_ref, g_ref, b_ref, o_ref, *, eps, inv_n):
    y = _ln_math(x_ref[...].astype(jnp.float32), g_ref[...], b_ref[...],
                 None, eps, inv_n)
    o_ref[...] = y.astype(o_ref.dtype)


def _ln_seg_kernel(x_ref, g_ref, b_ref, s_ref, o_ref, *, eps, inv_n):
    y = _ln_math(x_ref[...].astype(jnp.float32), g_ref[...], b_ref[...],
                 s_ref[...], eps, inv_n)
    o_ref[...] = y.astype(o_ref.dtype)


def _ln_proj_kernel(x_ref, g_ref, b_ref, w_ref, pb_ref, o_ref, *, eps, inv_n):
    y = _ln_math(x_ref[...].astype(jnp.float32), g_ref[...], b_ref[...],
                 None, eps, inv_n)
    o_ref[...] = (jnp.dot(y, w_ref[...], preferred_element_type=jnp.float32)
                  + pb_ref[...]).astype(o_ref.dtype)


def _ln_seg_proj_kernel(x_ref, g_ref, b_ref, s_ref, w_ref, pb_ref, o_ref, *,
                        eps, inv_n):
    y = _ln_math(x_ref[...].astype(jnp.float32), g_ref[...], b_ref[...],
                 s_ref[...], eps, inv_n)
    o_ref[...] = (jnp.dot(y, w_ref[...], preferred_element_type=jnp.float32)
                  + pb_ref[...]).astype(o_ref.dtype)


# ----------------------------------------------------------------------------
# Wrapper: fused LayerNorm (optionally + fn's leading linear projection)
# ----------------------------------------------------------------------------
def _prenorm_pallas(x, gamma, beta, eps, weight=None, bias=None):
    orig_shape = x.shape
    D = orig_shape[-1]
    R = math.prod(orig_shape[:-1]) if len(orig_shape) > 1 else 1
    io_dtype = x.dtype
    Dout = D if weight is None else weight.shape[1]

    # ---- lane packing: for D < 128 pack P = 128 // D rows per 128-lane row so
    #      every load/store is lane-dense (no masked partial stores).
    P = 1
    if (D < 128 and 128 % D == 0 and R % (128 // D) == 0
            and (weight is None or Dout == D)):
        P = 128 // D
    Dp = P * D
    Dpo = P * Dout
    Rp = R // P
    x2 = x.reshape(Rp, Dp)                     # free reshape, no extra HBM pass

    g2 = jnp.tile(gamma.reshape(1, D).astype(jnp.float32), (1, P))
    b2 = jnp.tile(beta.reshape(1, D).astype(jnp.float32), (1, P))

    # ---- generation-aware tile sizing: biggest VMEM-fitting block.
    vmem_cap, num_cores = _tpu_budget()
    sub = _sublane_quantum(io_dtype)
    target_block = (4 if vmem_cap <= 64 * _MIB else 8) * _MIB
    row_bytes = Dp * jnp.dtype(io_dtype).itemsize
    cap_rows = max(sub, (target_block // row_bytes) // sub * sub)
    cap_rows = min(cap_rows, 8192)

    if Rp <= cap_rows:
        if num_cores > 1 and Rp > sub:
            # v7x only: split a would-be single-step grid so both TCs get work.
            tr = min(Rp, _round_up(pl.cdiv(Rp, 2), sub))
        else:
            tr = Rp
    else:
        tr = cap_rows
    grid = (pl.cdiv(Rp, tr),)   # no wrapper-side pad/slice: tail block is masked

    kernel = _ln_kernel
    in_specs = [
        pl.BlockSpec((tr, Dp), lambda i: (i, 0)),
        pl.BlockSpec((1, Dp), lambda i: (0, 0)),
        pl.BlockSpec((1, Dp), lambda i: (0, 0)),
    ]
    args = [x2, g2, b2]

    if P > 1:
        # Block-diagonal ones matrix for the segmented lane reduction.
        seg = jnp.kron(jnp.eye(P, dtype=jnp.float32),
                       jnp.ones((D, D), jnp.float32))
        in_specs.append(pl.BlockSpec((Dp, Dp), lambda i: (0, 0)))
        args.append(seg)
        kernel = _ln_seg_kernel

    if weight is not None:
        w2 = weight.astype(jnp.float32)
        pb = (jnp.zeros((Dout,), jnp.float32) if bias is None
              else bias.astype(jnp.float32))
        if P > 1:
            w2 = jnp.kron(jnp.eye(P, dtype=jnp.float32), w2)   # block-diag W
            pb = jnp.tile(pb, P)
            kernel = _ln_seg_proj_kernel
        else:
            kernel = _ln_proj_kernel
        in_specs.append(pl.BlockSpec((Dp, Dpo), lambda i: (0, 0)))
        in_specs.append(pl.BlockSpec((1, Dpo), lambda i: (0, 0)))
        args.extend([w2, pb.reshape(1, Dpo)])

    out = pl.pallas_call(
        functools.partial(kernel, eps=eps, inv_n=1.0 / D),
        out_shape=jax.ShapeDtypeStruct((Rp, Dpo), io_dtype),
        grid=grid,
        in_specs=in_specs,
        out_specs=pl.BlockSpec((tr, Dpo), lambda i: (i, 0)),
        compiler_params=pltpu.CompilerParams(
            dimension_semantics=("parallel",),
            vmem_limit_bytes=max(32 * _MIB,
                                 min(int(0.75 * vmem_cap), 100 * _MIB)),
        ),
    )(*args)

    return out.reshape(orig_shape[:-1] + (Dout,))


def layernorm_pallas(x, gamma, beta, eps=1e-5):
    """Fused LayerNorm over the last dim of x (Pallas TPU)."""
    return _prenorm_pallas(x, gamma, beta, eps)


def prenorm_linear_pallas(x, gamma, beta, weight, bias=None, eps=1e-5):
    """LayerNorm + linear projection fused into one Pallas kernel."""
    return _prenorm_pallas(x, gamma, beta, eps, weight=weight, bias=bias)


# ----------------------------------------------------------------------------
# PreNorm module: fn(LayerNorm(x), **kwargs), exactly like the PyTorch module
# ----------------------------------------------------------------------------
class Linear:
    """Minimal linear layer (weight stored as (Din, Dout)); recognized by
    PreNorm so its matmul is fused into the LayerNorm kernel epilogue."""

    def __init__(self, weight, bias=None):
        self.weight = weight
        self.bias = bias

    def __call__(self, x):
        y = x @ self.weight
        if self.bias is not None:
            y = y + self.bias
        return y


class PreNorm:
    def __init__(self, dim, fn, eps=1e-5):
        self.dim = dim
        self.fn = fn
        self.eps = eps
        self.gamma = jnp.ones((dim,), jnp.float32)
        self.beta = jnp.zeros((dim,), jnp.float32)

    def __call__(self, x, **kwargs):
        if isinstance(self.fn, Linear) and not kwargs:
            # Fuse fn's leading matmul into the LayerNorm kernel epilogue.
            return prenorm_linear_pallas(x, self.gamma, self.beta,
                                         self.fn.weight, self.fn.bias, self.eps)
        # TODO(synk): fn is an arbitrary nn.Module in PyTorch; non-linear fn
        # (Attention / FeedForward) runs as plain JAX on the kernel output.
        return self.fn(layernorm_pallas(x, self.gamma, self.beta, self.eps),
                       **kwargs)


# ----------------------------------------------------------------------------
# Pure-JAX reference LayerNorm (matches torch.nn.LayerNorm eval semantics)
# ----------------------------------------------------------------------------
def layernorm_ref(x, gamma, beta, eps=1e-5):
    mean = jnp.mean(x, axis=-1, keepdims=True)
    var = jnp.mean((x - mean) ** 2, axis=-1, keepdims=True)
    return (x - mean) / jnp.sqrt(var + eps) * gamma + beta


if __name__ == "__main__":
    key = jax.random.PRNGKey(0)
    k = jax.random.split(key, 8)

    # ---- main demo: PreNorm(dim=32) wrapping a linear projection (fused,
    #      lane-packed path: D=32 -> 4 rows per 128-lane row) ----------------
    B, N, D = 2, 8, 32
    x = jax.random.normal(k[0], (B, N, D), jnp.float32)
    gamma = 1.0 + 0.1 * jax.random.normal(k[1], (D,), jnp.float32)
    beta = 0.1 * jax.random.normal(k[2], (D,), jnp.float32)
    W = 0.1 * jax.random.normal(k[3], (D, D), jnp.float32)
    bvec = 0.1 * jax.random.normal(k[4], (D,), jnp.float32)

    prenorm = PreNorm(D, Linear(W, bvec))
    prenorm.gamma, prenorm.beta = gamma, beta
    out = jax.block_until_ready(prenorm(x))
    ref = layernorm_ref(x, gamma, beta) @ W + bvec
    assert out.shape == ref.shape == (B, N, D)
    assert jnp.max(jnp.abs(out - ref)) < 1e-4, "fused packed path mismatch"

    # ---- packed path with an arbitrary (non-fusable) fn --------------------
    prenorm2 = PreNorm(D, jax.nn.gelu)
    prenorm2.gamma, prenorm2.beta = gamma, beta
    out2 = jax.block_until_ready(prenorm2(x))
    ref2 = jax.nn.gelu(layernorm_ref(x, gamma, beta))
    assert jnp.max(jnp.abs(out2 - ref2)) < 1e-4, "packed LN path mismatch"

    # ---- plain (D >= 128) path: standalone LN and fused LN+Linear ----------
    D2, Dout2 = 256, 128
    x3 = jax.random.normal(k[5], (B, N, D2), jnp.float32)
    g3 = 1.0 + 0.1 * jax.random.normal(k[6], (D2,), jnp.float32)
    b3 = 0.1 * jax.random.normal(k[7], (D2,), jnp.float32)

    out3 = jax.block_until_ready(layernorm_pallas(x3, g3, b3))
    assert jnp.max(jnp.abs(out3 - layernorm_ref(x3, g3, b3))) < 1e-4, \
        "plain LN path mismatch"

    W3 = 0.05 * jax.random.normal(k[3], (D2, Dout2), jnp.float32)
    prenorm3 = PreNorm(D2, Linear(W3))          # no bias
    prenorm3.gamma, prenorm3.beta = g3, b3
    out4 = jax.block_until_ready(prenorm3(x3))
    ref4 = layernorm_ref(x3, g3, b3) @ W3
    assert out4.shape == (B, N, Dout2)
    assert jnp.max(jnp.abs(out4 - ref4)) < 1e-4, "fused plain path mismatch"

    print("KERNEL_OK")
</pallas_src>

<mosaic_0001>
module attributes {stable_mosaic.version = 11 : i64} {
  func.func @_ln_seg_proj_kernel(%arg0: i32, %arg1: memref<4x128xf32, #tpu.memory_space<vmem>>, %arg2: memref<1x128xf32, #tpu.memory_space<vmem>>, %arg3: memref<1x128xf32, #tpu.memory_space<vmem>>, %arg4: memref<128x128xf32, #tpu.memory_space<vmem>>, %arg5: memref<128x128xf32, #tpu.memory_space<vmem>>, %arg6: memref<1x128xf32, #tpu.memory_space<vmem>>, %arg7: memref<4x128xf32, #tpu.memory_space<vmem>>) attributes {dimension_semantics = [#tpu.dimension_semantics<parallel>], iteration_bounds = array<i64: 1>, scalar_prefetch = 0 : i64, scratch_operands = 0 : i64, tpu.core_type = #tpu.core_type<tc>, window_params = [{transform_indices = @transform_0, window_bounds = array<i64: 4, 128>}, {pipeline_mode = #tpu.pipeline_mode<synchronous>, transform_indices = @transform_1, window_bounds = array<i64: 1, 128>}, {pipeline_mode = #tpu.pipeline_mode<synchronous>, transform_indices = @transform_2, window_bounds = array<i64: 1, 128>}, {pipeline_mode = #tpu.pipeline_mode<synchronous>, transform_indices = @transform_3, window_bounds = array<i64: 128, 128>}, {pipeline_mode = #tpu.pipeline_mode<synchronous>, transform_indices = @transform_4, window_bounds = array<i64: 128, 128>}, {pipeline_mode = #tpu.pipeline_mode<synchronous>, transform_indices = @transform_5, window_bounds = array<i64: 1, 128>}, {transform_indices = @transform_6, window_bounds = array<i64: 4, 128>}]} {
    %c0 = arith.constant 0 : index
    %c0_0 = arith.constant 0 : index
    %0 = vector.load %arg1[%c0, %c0_0] : memref<4x128xf32, #tpu.memory_space<vmem>>, vector<4x128xf32>
    %c0_1 = arith.constant 0 : index
    %c0_2 = arith.constant 0 : index
    %1 = vector.load %arg2[%c0_1, %c0_2] : memref<1x128xf32, #tpu.memory_space<vmem>>, vector<1x128xf32>
    %c0_3 = arith.constant 0 : index
    %c0_4 = arith.constant 0 : index
    %2 = vector.load %arg3[%c0_3, %c0_4] : memref<1x128xf32, #tpu.memory_space<vmem>>, vector<1x128xf32>
    %c0_5 = arith.constant 0 : index
    %c0_6 = arith.constant 0 : index
    %3 = vector.load %arg4[%c0_5, %c0_6] : memref<128x128xf32, #tpu.memory_space<vmem>>, vector<128x128xf32>
    %cst = arith.constant dense<0.000000e+00> : vector<4x128xf32>
    %4 = tpu.matmul %0, %3, %cst {dimension_numbers = #tpu.dot_dimension_numbers<[1], [0], [0], [1], [0, 0, 1, 1], [], []>} : vector<4x128xf32>, vector<128x128xf32>, vector<4x128xf32> -> vector<4x128xf32>
    %cst_7 = arith.constant 3.125000e-02 : f32
    %5 = vector.broadcast %cst_7 : f32 to vector<4x128xf32>
    %6 = arith.mulf %4, %5 : vector<4x128xf32>
    %7 = arith.subf %0, %6 : vector<4x128xf32>
    %8 = arith.mulf %7, %7 : vector<4x128xf32>
    %cst_8 = arith.constant dense<0.000000e+00> : vector<4x128xf32>
    %9 = tpu.matmul %8, %3, %cst_8 {dimension_numbers = #tpu.dot_dimension_numbers<[1], [0], [0], [1], [0, 0, 1, 1], [], []>} : vector<4x128xf32>, vector<128x128xf32>, vector<4x128xf32> -> vector<4x128xf32>
    %cst_9 = arith.constant 3.125000e-02 : f32
    %10 = vector.broadcast %cst_9 : f32 to vector<4x128xf32>
    %11 = arith.mulf %9, %10 : vector<4x128xf32>
    %cst_10 = arith.constant 9.99999974E-6 : f32
    %12 = vector.broadcast %cst_10 : f32 to vector<4x128xf32>
    %13 = arith.addf %11, %12 : vector<4x128xf32>
    %14 = math.rsqrt %13 : vector<4x128xf32>
    %15 = arith.mulf %7, %14 : vector<4x128xf32>
    %16 = vector.broadcast %1 : vector<1x128xf32> to vector<4x128xf32>
    %17 = arith.mulf %15, %16 : vector<4x128xf32>
    %18 = vector.broadcast %2 : vector<1x128xf32> to vector<4x128xf32>
    %19 = arith.addf %17, %18 : vector<4x128xf32>
    %c0_11 = arith.constant 0 : index
    %c0_12 = arith.constant 0 : index
    %20 = vector.load %arg5[%c0_11, %c0_12] : memref<128x128xf32, #tpu.memory_space<vmem>>, vector<128x128xf32>
    %cst_13 = arith.constant dense<0.000000e+00> : vector<4x128xf32>
    %21 = tpu.matmul %19, %20, %cst_13 {dimension_numbers = #tpu.dot_dimension_numbers<[1], [0], [0], [1], [0, 0, 1, 1], [], []>} : vector<4x128xf32>, vector<128x128xf32>, vector<4x128xf32> -> vector<4x128xf32>
    %c0_14 = arith.constant 0 : index
    %c0_15 = arith.constant 0 : index
    %22 = vector.load %arg6[%c0_14, %c0_15] : memref<1x128xf32, #tpu.memory_space<vmem>>, vector<1x128xf32>
    %23 = vector.broadcast %22 : vector<1x128xf32> to vector<4x128xf32>
    %24 = arith.addf %21, %23 : vector<4x128xf32>
    %c0_16 = arith.constant 0 : index
    %c0_17 = arith.constant 0 : index
    %25 = vector.load %arg7[%c0_16, %c0_17] : memref<4x128xf32, #tpu.memory_space<vmem>>, vector<4x128xf32>
    tpu.vector_store %arg7[%c0_16, %c0_17], %24 {strides = array<i32>} : memref<4x128xf32, #tpu.memory_space<vmem>>, vector<4x128xf32>,
    return
  }
  func.func @transform_0(%arg0: i32) -> (i32, i32) {
    %c0_i32 = arith.constant 0 : i32
    %c0_i32_0 = arith.constant 0 : i32
    return %arg0, %c0_i32 : i32, i32
  }
  func.func @transform_1(%arg0: i32) -> (i32, i32) {
    %c0_i32 = arith.constant 0 : i32
    %c0_i32_0 = arith.constant 0 : i32
    %c0_i32_1 = arith.constant 0 : i32
    return %c0_i32, %c0_i32_0 : i32, i32
  }
  func.func @transform_2(%arg0: i32) -> (i32, i32) {
    %c0_i32 = arith.constant 0 : i32
    %c0_i32_0 = arith.constant 0 : i32
    %c0_i32_1 = arith.constant 0 : i32
    return %c0_i32, %c0_i32_0 : i32, i32
  }
  func.func @transform_3(%arg0: i32) -> (i32, i32) {
    %c0_i32 = arith.constant 0 : i32
    %c0_i32_0 = arith.constant 0 : i32
    %c0_i32_1 = arith.constant 0 : i32
    return %c0_i32, %c0_i32_0 : i32, i32
  }
  func.func @transform_4(%arg0: i32) -> (i32, i32) {
    %c0_i32 = arith.constant 0 : i32
    %c0_i32_0 = arith.constant 0 : i32
    %c0_i32_1 = arith.constant 0 : i32
    return %c0_i32, %c0_i32_0 : i32, i32
  }
  func.func @transform_5(%arg0: i32) -> (i32, i32) {
    %c0_i32 = arith.constant 0 : i32
    %c0_i32_0 = arith.constant 0 : i32
    %c0_i32_1 = arith.constant 0 : i32
    return %c0_i32, %c0_i32_0 : i32, i32
  }
  func.func @transform_6(%arg0: i32) -> (i32, i32) {
    %c0_i32 = arith.constant 0 : i32
    %c0_i32_0 = arith.constant 0 : i32
    return %arg0, %c0_i32 : i32, i32
  }
}

</mosaic_0001>

<llo_original>
// kernel: tpu_custom_call.1
$region0: #{tpu_custom_call.1}
  #allocation0 [shape = 'u32[]', space=smem, size = 0x4, offset = 0x4, fixed_abs, tag = 'smem constant byte address 0x4 - core index']
  #allocation1 [shape = 'u32[144,128]{1,0:T(1,128)}', space=vmem, size = 0x12000, scoped, tag = 'internal scratch']
  %s0 = inlined_call_operand.hbm [shape: f32[4,128], index: 0, kind: input, shape index: {}]
  %s1 = inlined_call_operand.vmem [shape: f32[1,128], index: 1, kind: input, shape index: {}]
  %s2 = inlined_call_operand.vmem [shape: f32[1,128], index: 2, kind: input, shape index: {}]
  %s3 = inlined_call_operand.hbm [shape: f32[128,128], index: 3, kind: input, shape index: {}]
  %s4 = inlined_call_operand.hbm [shape: f32[128,128], index: 4, kind: input, shape index: {}]
  %s5 = inlined_call_operand.vmem [shape: f32[1,128], index: 5, kind: input, shape index: {}]
  %s6 = inlined_call_operand.hbm [shape: f32[4,128], index: 6, kind: output, shape index: {}]
  %s7 = sld [smem:[#allocation0]]
  $region46: #{tpu_custom_call.1} parent=0
    _
  %s9 = ssub.s32 1, %s7
  %s10 = scalar_select 0, %s9, %s7
  $region1: #{tpu_custom_call.1} parent=0
    #allocation2 [shape = 'u8[2048]{0}', space=vmem, size = 0x800, scoped, tag = 'input window, operand 0, single buffered']
    #allocation3 [shape = 's32[1]{0}', space=sflag, size = 0x4, scoped, tag = 'scoped memory for tpu_custom_call.1']
    #allocation4 [shape = 's32[1]{0}', space=sflag, size = 0x4, scoped, tag = 'scoped memory for tpu_custom_call.1']
    #allocation5 [shape = 'u8[65536]{0}', space=vmem, size = 0x10000, scoped, tag = 'input window, operand 3, single buffered']
    #allocation6 [shape = 's32[1]{0}', space=sflag, size = 0x4, scoped, tag = 'scoped memory for tpu_custom_call.1']
    #allocation7 [shape = 'u8[65536]{0}', space=vmem, size = 0x10000, scoped, tag = 'input window, operand 4, single buffered']
    #allocation8 [shape = 'u8[2048]{0}', space=vmem, size = 0x800, scoped, tag = 'output window, operand 0, single buffered']
    %11 = vsyncpa [#allocation3], 0
    %12 = vsyncpa [#allocation6], 0
    %13 = vsyncpa [#allocation4], 0
    // Predicated region
    $region2: #{tpu_custom_call.1} parent=1 // pred_check
      _
    $region3: #{tpu_custom_call.1} parent=1 // pred_check_branch
      %15 = sbr.rel (0) target = $region5
    $region4: #{tpu_custom_call.1} parent=1 // pred_region
      %s17 = ssub.s32 64, 64
      %18 = vsyncadd [#allocation3], %s17
      %s20 = sshll.u32 [#allocation2], 4
      %s21 = int_to_ptr.vmem [resolvable:$true] %s20
      %23 = dma.hbm_to_vmem [thread:$0]  %s0, 64, %s21, [#allocation3]
    $region5: #{tpu_custom_call.1} parent=1 // pred_fallthru
      _
    // Predicated region
    $region6: #{tpu_custom_call.1} parent=1 // pred_check
      _
    $region7: #{tpu_custom_call.1} parent=1 // pred_check_branch
      %25 = sbr.rel (0) target = $region9
    $region8: #{tpu_custom_call.1} parent=1 // pred_region
      _
    $region9: #{tpu_custom_call.1} parent=1 // pred_fallthru
      _
    // Predicated region
    $region10: #{tpu_custom_call.1} parent=1 // pred_check
      _
    $region11: #{tpu_custom_call.1} parent=1 // pred_check_branch
      %27 = sbr.rel (0) target = $region13
    $region12: #{tpu_custom_call.1} parent=1 // pred_region
      _
    $region13: #{tpu_custom_call.1} parent=1 // pred_fallthru
      _
    // Predicated region
    $region14: #{tpu_custom_call.1} parent=1 // pred_check
      _
    $region15: #{tpu_custom_call.1} parent=1 // pred_check_branch
      %29 = sbr.rel (0) target = $region17
    $region16: #{tpu_custom_call.1} parent=1 // pred_region
      %s31 = ssub.s32 2048, 2048
      %32 = vsyncadd [#allocation6], %s31
      %s33 = sshll.u32 [#allocation5], 4
      %s34 = int_to_ptr.vmem [resolvable:$true] %s33
      %39 = dma.hbm_to_vmem [thread:$0]  %s3, 2048, %s34, [#allocation6], 128, 128, 8
    $region17: #{tpu_custom_call.1} parent=1 // pred_fallthru
      _
    // Predicated region
    $region18: #{tpu_custom_call.1} parent=1 // pred_check
      _
    $region19: #{tpu_custom_call.1} parent=1 // pred_check_branch
      %41 = sbr.rel (0) target = $region21
    $region20: #{tpu_custom_call.1} parent=1 // pred_region
      %s43 = ssub.s32 2048, 2048
      %44 = vsyncadd [#allocation6], %s43
      %s45 = sshll.u32 [#allocation7], 4
      %s46 = int_to_ptr.vmem [resolvable:$true] %s45
      %51 = dma.hbm_to_vmem [thread:$0]  %s4, 2048, %s46, [#allocation6], 128, 128, 8
    $region21: #{tpu_custom_call.1} parent=1 // pred_fallthru
      _
    // Predicated region
    $region22: #{tpu_custom_call.1} parent=1 // pred_check
      _
    $region23: #{tpu_custom_call.1} parent=1 // pred_check_branch
      %53 = sbr.rel (0) target = $region25
    $region24: #{tpu_custom_call.1} parent=1 // pred_region
      _
    $region25: #{tpu_custom_call.1} parent=1 // pred_fallthru
      _
    // Predicated region
    $region26: #{tpu_custom_call.1} parent=1 // pred_check
      _
    $region27: #{tpu_custom_call.1} parent=1 // pred_check_branch
      %55 = sbr.rel (0) target = $region29
    $region28: #{tpu_custom_call.1} parent=1 // pred_region
      %56 = dma.done [#allocation3], 64
    $region29: #{tpu_custom_call.1} parent=1 // pred_fallthru
      _
    // Predicated region
    $region30: #{tpu_custom_call.1} parent=1 // pred_check
      _
    $region31: #{tpu_custom_call.1} parent=1 // pred_check_branch
      %58 = sbr.rel (0) target = $region33
    $region32: #{tpu_custom_call.1} parent=1 // pred_region
      %59 = dma.done [#allocation6], 2048
    $region33: #{tpu_custom_call.1} parent=1 // pred_fallthru
      _
    // Predicated region
    $region34: #{tpu_custom_call.1} parent=1 // pred_check
      _
    $region35: #{tpu_custom_call.1} parent=1 // pred_check_branch
      %61 = sbr.rel (0) target = $region37
    $region36: #{tpu_custom_call.1} parent=1 // pred_region
      %62 = dma.done [#allocation6], 2048
    $region37: #{tpu_custom_call.1} parent=1 // pred_fallthru
      _
    %v63 = vld [vmem:[#allocation2] sm:$0xf]
    %v64 = vld [vmem:[%s1] sm:$0x1]
    %v65 = vld [vmem:[%s2] sm:$0x1]
    %v66 = vld [vmem:[#allocation5] sm:$0xff]
    %v67 = vld [vmem:[#allocation5 + $0x8] sm:$0xff]
    %v68 = vld [vmem:[#allocation5 + $0x10] sm:$0xff]
    %v69 = vld [vmem:[#allocation5 + $0x18] sm:$0xff]
    %v70 = vld [vmem:[#allocation5 + $0x20] sm:$0xff]
    %v71 = vld [vmem:[#allocation5 + $0x28] sm:$0xff]
    %v72 = vld [vmem:[#allocation5 + $0x30] sm:$0xff]
    %v73 = vld [vmem:[#allocation5 + $0x38] sm:$0xff]
    %v74 = vld [vmem:[#allocation5 + $0x40] sm:$0xff]
    %v75 = vld [vmem:[#allocation5 + $0x48] sm:$0xff]
    %v76 = vld [vmem:[#allocation5 + $0x50] sm:$0xff]
    %v77 = vld [vmem:[#allocation5 + $0x58] sm:$0xff]
    %v78 = vld [vmem:[#allocation5 + $0x60] sm:$0xff]
    %v79 = vld [vmem:[#allocation5 + $0x68] sm:$0xff]
    %v80 = vld [vmem:[#allocation5 + $0x70] sm:$0xff]
    %v81 = vld [vmem:[#allocation5 + $0x78] sm:$0xff]
    %82 = vmatprep.subr.mxu0 0.0
    %83 = vmatpush1.msra.mxu0 %v66
    %84 = vmatprep.subr.mxu0 0.0
    %85 = vmatpush1.msra.mxu0 %v67
    %86 = vmatprep.subr.mxu0 0.0
    %87 = vmatpush1.msra.mxu0 %v68
    %88 = vmatprep.subr.mxu0 0.0
    %89 = vmatpush1.msra.mxu0 %v69
    %90 = vmatprep.subr.mxu0 0.0
    %91 = vmatpush1.msra.mxu0 %v70
    %92 = vmatprep.subr.mxu0 0.0
    %93 = vmatpush1.msra.mxu0 %v71
    %94 = vmatprep.subr.mxu0 0.0
    %95 = vmatpush1.msra.mxu0 %v72
    %96 = vmatprep.subr.mxu0 0.0
    %97 = vmatpush1.msra.mxu0 %v73
    %98 = vmatprep.subr.mxu0 0.0
    %99 = vmatpush1.msra.mxu0 %v74
    %100 = vmatprep.subr.mxu0 0.0
    %101 = vmatpush1.msra.mxu0 %v75
    %102 = vmatprep.subr.mxu0 0.0
    %103 = vmatpush1.msra.mxu0 %v76
    %104 = vmatprep.subr.mxu0 0.0
    %105 = vmatpush1.msra.mxu0 %v77
    %106 = vmatprep.subr.mxu0 0.0
    %107 = vmatpush1.msra.mxu0 %v78
    %108 = vmatprep.subr.mxu0 0.0
    %109 = vmatpush1.msra.mxu0 %v79
    %110 = vmatprep.subr.mxu0 0.0
    %111 = vmatpush1.msra.mxu0 %v80
    %112 = vmatprep.subr.mxu0 0.0
    %113 = vmatpush1.msra.mxu0 %v81
    %114 = vmatprep.subr.mxu0 0.0
    %115 = vmatpush1.msra.mxu0 0.0
    %116 = vmatprep.subr.mxu0 0.0
    %117 = vmatpush1.msra.mxu0 0.0
    %118 = vmatprep.subr.mxu0 0.0
    %119 = vmatpush1.msra.mxu0 0.0
    %120 = vmatprep.subr.mxu0 0.0
    %121 = vmatpush1.msra.mxu0 0.0
    %122 = vmatprep.subr.mxu0 0.0
    %123 = vmatpush1.msra.mxu0 0.0
    %124 = vmatprep.subr.mxu0 0.0
    %125 = vmatpush1.msra.mxu0 0.0
    %126 = vmatprep.subr.mxu0 0.0
    %127 = vmatpush1.msra.mxu0 0.0
    %128 = vmatprep.subr.mxu0 0.0
    %129 = vmatpush1.msra.mxu0 0.0
    %130 = vmatprep.subr.mxu0 0.0
    %131 = vmatpush1.msra.mxu0 0.0
    %132 = vmatprep.subr.mxu0 0.0
    %133 = vmatpush1.msra.mxu0 0.0
    %134 = vmatprep.subr.mxu0 0.0
    %135 = vmatpush1.msra.mxu0 0.0
    %136 = vmatprep.subr.mxu0 0.0
    %137 = vmatpush1.msra.mxu0 0.0
    %138 = vmatprep.subr.mxu0 0.0
    %139 = vmatpush1.msra.mxu0 0.0
    %140 = vmatprep.subr.mxu0 0.0
    %141 = vmatpush1.msra.mxu0 0.0
    %142 = vmatprep.subr.mxu0 0.0
    %143 = vmatpush1.msra.mxu0 0.0
    %144 = vmatprep.subr.mxu0 0.0
    %145 = vmatpush1.msra.mxu0 0.0
    %146 = vmatprep.mubr.f32.mxu0 0.0
    %147 = vmatmul.mubr.f32.gmra.mrb[0].mxu0 %v63
    %v148 = vpop.f32.mrb[0].mxu0
    %v149 = vadd.f32 0.0, %v148
    %v150 = vpop.f32.mrb[0].mxu0
    %151 = vdwg.mxu0
    %v152 = vmul.f32 %v149, 0.03125
    %v153 = vsub.f32 %v63, %v152
    %v154 = vmul.f32 %v153, %v153
    %155 = vmatprep.subr.mxu0 0.0
    %156 = vmatpush1.msra.mxu0 %v66
    %157 = vmatprep.subr.mxu0 0.0
    %158 = vmatpush1.msra.mxu0 %v67
    %159 = vmatprep.subr.mxu0 0.0
    %160 = vmatpush1.msra.mxu0 %v68
    %161 = vmatprep.subr.mxu0 0.0
    %162 = vmatpush1.msra.mxu0 %v69
    %163 = vmatprep.subr.mxu0 0.0
    %164 = vmatpush1.msra.mxu0 %v70
    %165 = vmatprep.subr.mxu0 0.0
    %166 = vmatpush1.msra.mxu0 %v71
    %167 = vmatprep.subr.mxu0 0.0
    %168 = vmatpush1.msra.mxu0 %v72
    %169 = vmatprep.subr.mxu0 0.0
    %170 = vmatpush1.msra.mxu0 %v73
    %171 = vmatprep.subr.mxu0 0.0
    %172 = vmatpush1.msra.mxu0 %v74
    %173 = vmatprep.subr.mxu0 0.0
    %174 = vmatpush1.msra.mxu0 %v75
    %175 = vmatprep.subr.mxu0 0.0
    %176 = vmatpush1.msra.mxu0 %v76
    %177 = vmatprep.subr.mxu0 0.0
    %178 = vmatpush1.msra.mxu0 %v77
    %179 = vmatprep.subr.mxu0 0.0
    %180 = vmatpush1.msra.mxu0 %v78
    %181 = vmatprep.subr.mxu0 0.0
    %182 = vmatpush1.msra.mxu0 %v79
    %183 = vmatprep.subr.mxu0 0.0
    %184 = vmatpush1.msra.mxu0 %v80
    %185 = vmatprep.subr.mxu0 0.0
    %186 = vmatpush1.msra.mxu0 %v81
    %187 = vmatprep.subr.mxu0 0.0
    %188 = vmatpush1.msra.mxu0 0.0
    %189 = vmatprep.subr.mxu0 0.0
    %190 = vmatpush1.msra.mxu0 0.0
    %191 = vmatprep.subr.mxu0 0.0
    %192 = vmatpush1.msra.mxu0 0.0
    %193 = vmatprep.subr.mxu0 0.0
    %194 = vmatpush1.msra.mxu0 0.0
    %195 = vmatprep.subr.mxu0 0.0
    %196 = vmatpush1.msra.mxu0 0.0
    %197 = vmatprep.subr.mxu0 0.0
    %198 = vmatpush1.msra.mxu0 0.0
    %199 = vmatprep.subr.mxu0 0.0
    %200 = vmatpush1.msra.mxu0 0.0
    %201 = vmatprep.subr.mxu0 0.0
    %202 = vmatpush1.msra.mxu0 0.0
    %203 = vmatprep.subr.mxu0 0.0
    %204 = vmatpush1.msra.mxu0 0.0
    %205 = vmatprep.subr.mxu0 0.0
    %206 = vmatpush1.msra.mxu0 0.0
    %207 = vmatprep.subr.mxu0 0.0
    %208 = vmatpush1.msra.mxu0 0.0
    %209 = vmatprep.subr.mxu0 0.0
    %210 = vmatpush1.msra.mxu0 0.0
    %211 = vmatprep.subr.mxu0 0.0
    %212 = vmatpush1.msra.mxu0 0.0
    %213 = vmatprep.subr.mxu0 0.0
    %214 = vmatpush1.msra.mxu0 0.0
    %215 = vmatprep.subr.mxu0 0.0
    %216 = vmatpush1.msra.mxu0 0.0
    %217 = vmatprep.subr.mxu0 0.0
    %218 = vmatpush1.msra.mxu0 0.0
    %219 = vmatprep.mubr.f32.mxu0 0.0
    %220 = vmatmul.mubr.f32.gmra.mrb[0].mxu0 %v154
    %v221 = vpop.f32.mrb[0].mxu0
    %v222 = vadd.f32 0.0, %v221
    %v223 = vpop.f32.mrb[0].mxu0
    %224 = vdwg.mxu0
    %v225 = vmul.f32 %v222, 0.03125
    %v226 = vadd.f32 %v225, 1e-05
    %v227 = vrsqrt.pop %v226
    %v228 = vmul.f32 %v153, %v227
    %v230 = vlaneseq
    %v231 = vshrl.u32 %v230, 7
    %v232 = vsub.s32 0, %v231
    %v233 = vrot.slane %v64, %v232
    %v235 = vmul.f32 %v228, %v233
    %v237 = vlaneseq
    %v238 = vshrl.u32 %v237, 7
    %v239 = vsub.s32 0, %v238
    %v240 = vrot.slane %v65, %v239
    %v242 = vadd.f32 %v235, %v240
    %v243 = vld [vmem:[#allocation7] sm:$0xff]
    %v244 = vld [vmem:[#allocation7 + $0x8] sm:$0xff]
    %v245 = vld [vmem:[#allocation7 + $0x10] sm:$0xff]
    %v246 = vld [vmem:[#allocation7 + $0x18] sm:$0xff]
    %v247 = vld [vmem:[#allocation7 + $0x20] sm:$0xff]
    %v248 = vld [vmem:[#allocation7 + $0x28] sm:$0xff]
    %v249 = vld [vmem:[#allocation7 + $0x30] sm:$0xff]
    %v250 = vld [vmem:[#allocation7 + $0x38] sm:$0xff]
    %v251 = vld [vmem:[#allocation7 + $0x40] sm:$0xff]
    %v252 = vld [vmem:[#allocation7 + $0x48] sm:$0xff]
    %v253 = vld [vmem:[#allocation7 + $0x50] sm:$0xff]
    %v254 = vld [vmem:[#allocation7 + $0x58] sm:$0xff]
    %v255 = vld [vmem:[#allocation7 + $0x60] sm:$0xff]
    %v256 = vld [vmem:[#allocation7 + $0x68] sm:$0xff]
    %v257 = vld [vmem:[#allocation7 + $0x70] sm:$0xff]
    %v258 = vld [vmem:[#allocation7 + $0x78] sm:$0xff]
    %v259 = vld [vmem:[%s5] sm:$0x1]
    %v261 = vlaneseq
    %v262 = vshrl.u32 %v261, 7
    %v263 = vsub.s32 0, %v262
    %v264 = vrot.slane %v259, %v263
    %266 = vmatprep.subr.mxu0 0.0
    %267 = vmatpush1.msra.mxu0 %v243
    %268 = vmatprep.subr.mxu0 0.0
    %269 = vmatpush1.msra.mxu0 %v244
    %270 = vmatprep.subr.mxu0 0.0
    %271 = vmatpush1.msra.mxu0 %v245
    %272 = vmatprep.subr.mxu0 0.0
    %273 = vmatpush1.msra.mxu0 %v246
    %274 = vmatprep.subr.mxu0 0.0
    %275 = vmatpush1.msra.mxu0 %v247
    %276 = vmatprep.subr.mxu0 0.0
    %277 = vmatpush1.msra.mxu0 %v248
    %278 = vmatprep.subr.mxu0 0.0
    %279 = vmatpush1.msra.mxu0 %v249
    %280 = vmatprep.subr.mxu0 0.0
    %281 = vmatpush1.msra.mxu0 %v250
    %282 = vmatprep.subr.mxu0 0.0
    %283 = vmatpush1.msra.mxu0 %v251
    %284 = vmatprep.subr.mxu0 0.0
    %285 = vmatpush1.msra.mxu0 %v252
    %286 = vmatprep.subr.mxu0 0.0
    %287 = vmatpush1.msra.mxu0 %v253
    %288 = vmatprep.subr.mxu0 0.0
    %289 = vmatpush1.msra.mxu0 %v254
    %290 = vmatprep.subr.mxu0 0.0
    %291 = vmatpush1.msra.mxu0 %v255
    %292 = vmatprep.subr.mxu0 0.0
    %293 = vmatpush1.msra.mxu0 %v256
    %294 = vmatprep.subr.mxu0 0.0
    %295 = vmatpush1.msra.mxu0 %v257
    %296 = vmatprep.subr.mxu0 0.0
    %297 = vmatpush1.msra.mxu0 %v258
    %298 = vmatprep.subr.mxu0 0.0
    %299 = vmatpush1.msra.mxu0 0.0
    %300 = vmatprep.subr.mxu0 0.0
    %301 = vmatpush1.msra.mxu0 0.0
    %302 = vmatprep.subr.mxu0 0.0
    %303 = vmatpush1.msra.mxu0 0.0
    %304 = vmatprep.subr.mxu0 0.0
    %305 = vmatpush1.msra.mxu0 0.0
    %306 = vmatprep.subr.mxu0 0.0
    %307 = vmatpush1.msra.mxu0 0.0
    %308 = vmatprep.subr.mxu0 0.0
    %309 = vmatpush1.msra.mxu0 0.0
    %310 = vmatprep.subr.mxu0 0.0
    %311 = vmatpush1.msra.mxu0 0.0
    %312 = vmatprep.subr.mxu0 0.0
    %313 = vmatpush1.msra.mxu0 0.0
    %314 = vmatprep.subr.mxu0 0.0
    %315 = vmatpush1.msra.mxu0 0.0
    %316 = vmatprep.subr.mxu0 0.0
    %317 = vmatpush1.msra.mxu0 0.0
    %318 = vmatprep.subr.mxu0 0.0
    %319 = vmatpush1.msra.mxu0 0.0
    %320 = vmatprep.subr.mxu0 0.0
    %321 = vmatpush1.msra.mxu0 0.0
    %322 = vmatprep.subr.mxu0 0.0
    %323 = vmatpush1.msra.mxu0 0.0
    %324 = vmatprep.subr.mxu0 0.0
    %325 = vmatpush1.msra.mxu0 0.0
    %326 = vmatprep.subr.mxu0 0.0
    %327 = vmatpush1.msra.mxu0 0.0
    %328 = vmatprep.subr.mxu0 0.0
    %329 = vmatpush1.msra.mxu0 0.0
    %330 = vmatprep.mubr.f32.mxu0 0.0
    %331 = vmatmul.mubr.f32.gmra.mrb[0].mxu0 %v242
    %v332 = vpop.f32.mrb[0].mxu0
    %v333 = vadd.f32 %v264, %v332
    %v334 = vpop.f32.mrb[0].mxu0
    %335 = vdwg.mxu0
    %336 = vst [vmem:[#allocation8] sm:$0xf] %v333
    // Predicated region
    $region38: #{tpu_custom_call.1} parent=1 // pred_check
      _
    $region39: #{tpu_custom_call.1} parent=1 // pred_check_branch
      %338 = sbr.rel (0) target = $region41
    $region40: #{tpu_custom_call.1} parent=1 // pred_region
      %s340 = ssub.s32 64, 64
      %341 = vsyncadd [#allocation4], %s340
      %s343 = sshll.u32 [#allocation8], 4
      %s344 = int_to_ptr.vmem [resolvable:$true] %s343
      %346 = dma.vmem_to_hbm [thread:$0]  %s344, 64, %s6, [#allocation4]
    $region41: #{tpu_custom_call.1} parent=1 // pred_fallthru
      _
    // Predicated region
    $region42: #{tpu_custom_call.1} parent=1 // pred_check
      _
    $region43: #{tpu_custom_call.1} parent=1 // pred_check_branch
      %348 = sbr.rel (0) target = $region45
    $region44: #{tpu_custom_call.1} parent=1 // pred_region
      %349 = dma.done [#allocation4], 64
    $region45: #{tpu_custom_call.1} parent=1 // pred_fallthru
      _
    %350 = vsyncpa [#allocation3], 1
    %351 = vsyncpa [#allocation6], 1
    %352 = vsyncpa [#allocation4], 1

</llo_original>
